<compile_context>
chip_gen: v7x
topology: tpu7x:2x2x1
jax: 0.10.0
libtpu: 0.0.40
codegen_flags: <defaults>
</compile_context>

<pallas_src>
import jax
import jax.numpy as jnp
from jax.experimental import pallas as pl
from jax.experimental.pallas import tpu as pltpu

_LANE = 128
_SUBLANE = 8


def _mlp_kernel(x_ref, w1_ref, b1_ref, w2_ref, b2_ref, w3_ref, b3_ref, o_ref):
    # x_ref: (BT, 1). Input normalization already folded into w1/b1 by prepare_params.
    x = x_ref[...]

    # Layer 1 (in_features == 1): VPU broadcast multiply-add instead of a K=1 MXU matmul.
    h1 = jnp.maximum(x * w1_ref[...] + b1_ref[...], 0.0)                 # (BT, Hp)

    # Layer 2: Linear(H, H) + ReLU on the MXU.
    h2 = jnp.dot(h1, w2_ref[...], preferred_element_type=jnp.float32) + b2_ref[...]
    h2 = jnp.maximum(h2, 0.0)                                            # (BT, Hp)

    # Layer 3: Linear(H, 20). Output last dim == 20 == full array dim, so the
    # store is a masked vst on a contiguous (BT, 20) HBM tile (5-6x fewer
    # writeback bytes than padding to 128 lanes).
    o_ref[...] = (jnp.dot(h2, w3_ref[...], preferred_element_type=jnp.float32)
                  + b3_ref[...]).astype(o_ref.dtype)                     # (BT, 20)


def prepare_params(params, input_min, input_max):
    """One-time prep (NOT per forward call): fold the affine input normalization
    into layer 1 and zero-pad the hidden dim to lane width.

    params = (w1 (1,H), b1 (1,H), w2 (H,H), b2 (1,H), w3 (H,20), b3 (1,20)),
    weights stored as (in_features, out_features).
    Note: input_max == input_min divides by zero (same as the PyTorch module).
    """
    w1, b1, w2, b2, w3, b3 = params
    H = w1.shape[1]
    OUT = w3.shape[1]
    H_PAD = max(_LANE, pl.cdiv(H, _LANE) * _LANE)

    # x_n = scale*x + shift  ==>  x_n @ W1 + b1 = x @ (scale*W1) + (shift*W1 + b1)
    scale = 2.0 / (input_max - input_min)
    shift = -2.0 * input_min / (input_max - input_min) - 1.0
    w1f = scale * w1
    b1f = shift * w1 + b1

    w1p = jnp.zeros((1, H_PAD), jnp.float32).at[:, :H].set(w1f)
    b1p = jnp.zeros((1, H_PAD), jnp.float32).at[:, :H].set(b1f)
    w2p = jnp.zeros((H_PAD, H_PAD), jnp.float32).at[:H, :H].set(w2)
    b2p = jnp.zeros((1, H_PAD), jnp.float32).at[:, :H].set(b2)
    w3p = jnp.zeros((H_PAD, OUT), jnp.float32).at[:H, :].set(w3)
    b3p = b3.astype(jnp.float32).reshape(1, OUT)
    return (w1p, b1p, w2p, b2p, w3p, b3p)


def prediction_network_forward(x, prepared_params, *, block_batch=2048):
    """x: (B, 1) float32 -> (B, 20) float32, using prepare_params() output."""
    w1p, b1p, w2p, b2p, w3p, b3p = prepared_params
    B = x.shape[0]
    OUT = w3p.shape[1]

    # Batch tile: multiple of 8 sublanes, capped at block_batch, and also capped
    # near ceil(B/2) so the parallel grid axis has >= 2 steps whenever B allows
    # (keeps both TensorCores busy on v7x megacore).
    two_tc_bt = max(_SUBLANE, pl.cdiv(pl.cdiv(B, 2), _SUBLANE) * _SUBLANE)
    BT = min(block_batch, two_tc_bt)
    B_PAD = pl.cdiv(B, BT) * BT

    x = x.astype(jnp.float32)
    if B_PAD != B:
        x_in = jnp.zeros((B_PAD, 1), jnp.float32).at[:B, :].set(x)
    else:
        x_in = x  # fast path: no pad copy

    resident = lambda a: pl.BlockSpec(a.shape, lambda i: (0, 0))  # weights stay in VMEM

    out = pl.pallas_call(
        _mlp_kernel,
        out_shape=jax.ShapeDtypeStruct((B_PAD, OUT), jnp.float32),
        grid=(B_PAD // BT,),
        in_specs=[
            pl.BlockSpec((BT, 1), lambda i: (i, 0)),   # x: batch-tiled
            resident(w1p), resident(b1p),
            resident(w2p), resident(b2p),
            resident(w3p), resident(b3p),
        ],
        out_specs=pl.BlockSpec((BT, OUT), lambda i: (i, 0)),
        compiler_params=pltpu.CompilerParams(
            dimension_semantics=("parallel",),
            vmem_limit_bytes=32 * 1024 * 1024,
        ),
    )(x_in, w1p, b1p, w2p, b2p, w3p, b3p)

    if B_PAD != B:
        out = out[:B, :]  # only slice when batch was actually padded
    return out


def init_params(key, hidden):
    """Deterministic init mirroring nn.Linear shapes (stored transposed as (in, out))."""
    dims = [(1, hidden), (hidden, hidden), (hidden, 20)]
    params = []
    for i, (fan_in, fan_out) in enumerate(dims):
        kw, kb = jax.random.split(jax.random.fold_in(key, i))
        bound = 1.0 / jnp.sqrt(fan_in)
        w = jax.random.uniform(kw, (fan_in, fan_out), jnp.float32, -bound, bound)
        b = jax.random.uniform(kb, (1, fan_out), jnp.float32, -bound, bound)
        params += [w, b]
    return tuple(params)


if __name__ == "__main__":
    key = jax.random.PRNGKey(0)
    hidden = 32
    batch = 16
    input_min, input_max = 0.0, 10.0

    params = init_params(key, hidden)
    prepared = prepare_params(params, input_min, input_max)   # one-time prep
    x = jax.random.uniform(jax.random.fold_in(key, 100), (batch, 1),
                           jnp.float32, input_min, input_max)

    out = prediction_network_forward(x, prepared)
    jax.block_until_ready(out)

    # Reference check in plain JAX (same math as the PyTorch forward).
    w1, b1, w2, b2, w3, b3 = params
    xr = ((x - input_min) / (input_max - input_min) - 0.5) * 2.0
    h1 = jnp.maximum(xr @ w1 + b1, 0.0)
    h2 = jnp.maximum(h1 @ w2 + b2, 0.0)
    ref = h2 @ w3 + b3

    assert out.shape == (batch, 20)
    assert jnp.allclose(out, ref, atol=1e-4, rtol=1e-4), (
        f"max abs err {jnp.max(jnp.abs(out - ref))}")

    print("KERNEL_OK")
</pallas_src>

<mosaic_0001>
module attributes {stable_mosaic.version = 11 : i64} {
  func.func @_mlp_kernel(%arg0: i32, %arg1: memref<8x1xf32, #tpu.memory_space<vmem>>, %arg2: memref<1x128xf32, #tpu.memory_space<vmem>>, %arg3: memref<1x128xf32, #tpu.memory_space<vmem>>, %arg4: memref<128x128xf32, #tpu.memory_space<vmem>>, %arg5: memref<1x128xf32, #tpu.memory_space<vmem>>, %arg6: memref<128x20xf32, #tpu.memory_space<vmem>>, %arg7: memref<1x20xf32, #tpu.memory_space<vmem>>, %arg8: memref<8x20xf32, #tpu.memory_space<vmem>>) attributes {dimension_semantics = [#tpu.dimension_semantics<parallel>], iteration_bounds = array<i64: 2>, scalar_prefetch = 0 : i64, scratch_operands = 0 : i64, tpu.core_type = #tpu.core_type<tc>, window_params = [{transform_indices = @transform_0, window_bounds = array<i64: 8, 1>}, {pipeline_mode = #tpu.pipeline_mode<synchronous>, transform_indices = @transform_1, window_bounds = array<i64: 1, 128>}, {pipeline_mode = #tpu.pipeline_mode<synchronous>, transform_indices = @transform_2, window_bounds = array<i64: 1, 128>}, {pipeline_mode = #tpu.pipeline_mode<synchronous>, transform_indices = @transform_3, window_bounds = array<i64: 128, 128>}, {pipeline_mode = #tpu.pipeline_mode<synchronous>, transform_indices = @transform_4, window_bounds = array<i64: 1, 128>}, {pipeline_mode = #tpu.pipeline_mode<synchronous>, transform_indices = @transform_5, window_bounds = array<i64: 128, 20>}, {pipeline_mode = #tpu.pipeline_mode<synchronous>, transform_indices = @transform_6, window_bounds = array<i64: 1, 20>}, {transform_indices = @transform_7, window_bounds = array<i64: 8, 20>}]} {
    %c0 = arith.constant 0 : index
    %c0_0 = arith.constant 0 : index
    %0 = vector.load %arg1[%c0, %c0_0] : memref<8x1xf32, #tpu.memory_space<vmem>>, vector<8x1xf32>
    %c0_1 = arith.constant 0 : index
    %c0_2 = arith.constant 0 : index
    %1 = vector.load %arg2[%c0_1, %c0_2] : memref<1x128xf32, #tpu.memory_space<vmem>>, vector<1x128xf32>
    %2 = vector.broadcast %0 : vector<8x1xf32> to vector<8x128xf32>
    %3 = vector.broadcast %1 : vector<1x128xf32> to vector<8x128xf32>
    %4 = arith.mulf %2, %3 : vector<8x128xf32>
    %c0_3 = arith.constant 0 : index
    %c0_4 = arith.constant 0 : index
    %5 = vector.load %arg3[%c0_3, %c0_4] : memref<1x128xf32, #tpu.memory_space<vmem>>, vector<1x128xf32>
    %6 = vector.broadcast %5 : vector<1x128xf32> to vector<8x128xf32>
    %7 = arith.addf %4, %6 : vector<8x128xf32>
    %cst = arith.constant 0.000000e+00 : f32
    %8 = vector.broadcast %cst : f32 to vector<8x128xf32>
    %9 = arith.maximumf %7, %8 : vector<8x128xf32>
    %c0_5 = arith.constant 0 : index
    %c0_6 = arith.constant 0 : index
    %10 = vector.load %arg4[%c0_5, %c0_6] : memref<128x128xf32, #tpu.memory_space<vmem>>, vector<128x128xf32>
    %cst_7 = arith.constant dense<0.000000e+00> : vector<8x128xf32>
    %11 = tpu.matmul %9, %10, %cst_7 {dimension_numbers = #tpu.dot_dimension_numbers<[1], [0], [0], [1], [0, 0, 1, 1], [], []>} : vector<8x128xf32>, vector<128x128xf32>, vector<8x128xf32> -> vector<8x128xf32>
    %c0_8 = arith.constant 0 : index
    %c0_9 = arith.constant 0 : index
    %12 = vector.load %arg5[%c0_8, %c0_9] : memref<1x128xf32, #tpu.memory_space<vmem>>, vector<1x128xf32>
    %13 = vector.broadcast %12 : vector<1x128xf32> to vector<8x128xf32>
    %14 = arith.addf %11, %13 : vector<8x128xf32>
    %cst_10 = arith.constant 0.000000e+00 : f32
    %15 = vector.broadcast %cst_10 : f32 to vector<8x128xf32>
    %16 = arith.maximumf %14, %15 : vector<8x128xf32>
    %c0_11 = arith.constant 0 : index
    %c0_12 = arith.constant 0 : index
    %17 = vector.load %arg6[%c0_11, %c0_12] : memref<128x20xf32, #tpu.memory_space<vmem>>, vector<128x20xf32>
    %cst_13 = arith.constant dense<0.000000e+00> : vector<8x20xf32>
    %18 = tpu.matmul %16, %17, %cst_13 {dimension_numbers = #tpu.dot_dimension_numbers<[1], [0], [0], [1], [0, 0, 1, 1], [], []>} : vector<8x128xf32>, vector<128x20xf32>, vector<8x20xf32> -> vector<8x20xf32>
    %c0_14 = arith.constant 0 : index
    %c0_15 = arith.constant 0 : index
    %19 = vector.load %arg7[%c0_14, %c0_15] : memref<1x20xf32, #tpu.memory_space<vmem>>, vector<1x20xf32>
    %20 = vector.broadcast %19 : vector<1x20xf32> to vector<8x20xf32>
    %21 = arith.addf %18, %20 : vector<8x20xf32>
    %c0_16 = arith.constant 0 : index
    %c0_17 = arith.constant 0 : index
    %22 = vector.load %arg8[%c0_16, %c0_17] : memref<8x20xf32, #tpu.memory_space<vmem>>, vector<8x20xf32>
    tpu.vector_store %arg8[%c0_16, %c0_17], %21 {strides = array<i32>} : memref<8x20xf32, #tpu.memory_space<vmem>>, vector<8x20xf32>,
    return
  }
  func.func @transform_0(%arg0: i32) -> (i32, i32) {
    %c0_i32 = arith.constant 0 : i32
    %c0_i32_0 = arith.constant 0 : i32
    return %arg0, %c0_i32 : i32, i32
  }
  func.func @transform_1(%arg0: i32) -> (i32, i32) {
    %c0_i32 = arith.constant 0 : i32
    %c0_i32_0 = arith.constant 0 : i32
    %c0_i32_1 = arith.constant 0 : i32
    return %c0_i32, %c0_i32_0 : i32, i32
  }
  func.func @transform_2(%arg0: i32) -> (i32, i32) {
    %c0_i32 = arith.constant 0 : i32
    %c0_i32_0 = arith.constant 0 : i32
    %c0_i32_1 = arith.constant 0 : i32
    return %c0_i32, %c0_i32_0 : i32, i32
  }
  func.func @transform_3(%arg0: i32) -> (i32, i32) {
    %c0_i32 = arith.constant 0 : i32
    %c0_i32_0 = arith.constant 0 : i32
    %c0_i32_1 = arith.constant 0 : i32
    return %c0_i32, %c0_i32_0 : i32, i32
  }
  func.func @transform_4(%arg0: i32) -> (i32, i32) {
    %c0_i32 = arith.constant 0 : i32
    %c0_i32_0 = arith.constant 0 : i32
    %c0_i32_1 = arith.constant 0 : i32
    return %c0_i32, %c0_i32_0 : i32, i32
  }
  func.func @transform_5(%arg0: i32) -> (i32, i32) {
    %c0_i32 = arith.constant 0 : i32
    %c0_i32_0 = arith.constant 0 : i32
    %c0_i32_1 = arith.constant 0 : i32
    return %c0_i32, %c0_i32_0 : i32, i32
  }
  func.func @transform_6(%arg0: i32) -> (i32, i32) {
    %c0_i32 = arith.constant 0 : i32
    %c0_i32_0 = arith.constant 0 : i32
    %c0_i32_1 = arith.constant 0 : i32
    return %c0_i32, %c0_i32_0 : i32, i32
  }
  func.func @transform_7(%arg0: i32) -> (i32, i32) {
    %c0_i32 = arith.constant 0 : i32
    %c0_i32_0 = arith.constant 0 : i32
    return %arg0, %c0_i32 : i32, i32
  }
}

</mosaic_0001>

<llo_original>
// kernel: tpu_custom_call.1
$region0: #{tpu_custom_call.1}
  #allocation0 [shape = 'u32[]', space=smem, size = 0x4, offset = 0x4, fixed_abs, tag = 'smem constant byte address 0x4 - core index']
  #allocation1 [shape = 'u32[144,128]{1,0:T(1,128)}', space=vmem, size = 0x12000, scoped, tag = 'internal scratch']
  %s0 = inlined_call_operand.vmem [shape: f32[16,1], index: 0, kind: input, shape index: {}]
  %s1 = inlined_call_operand.vmem [shape: f32[1,128], index: 1, kind: input, shape index: {}]
  %s2 = inlined_call_operand.vmem [shape: f32[1,128], index: 2, kind: input, shape index: {}]
  %s3 = inlined_call_operand.vmem [shape: f32[128,128], index: 3, kind: input, shape index: {}]
  %s4 = inlined_call_operand.vmem [shape: f32[1,128], index: 4, kind: input, shape index: {}]
  %s5 = inlined_call_operand.vmem [shape: f32[128,20], index: 5, kind: input, shape index: {}]
  %s6 = inlined_call_operand.vmem [shape: f32[1,20], index: 6, kind: input, shape index: {}]
  %s7 = inlined_call_operand.hbm [shape: f32[16,20], index: 7, kind: output, shape index: {}]
  %s8 = sld [smem:[#allocation0]]
  $region61: #{tpu_custom_call.1} parent=0
    _
  %s10 = ssub.s32 1, %s8
  %s11 = scalar_select 0, %s10, %s8
  $region1: #{tpu_custom_call.1} parent=0
    #allocation2 [shape = 'u8[8192]{0}', space=vmem, size = 0x2000, scoped, tag = 'output window, operand 0']
    #allocation3 [shape = 's32[2]{0}', space=sflag, size = 0x8, scoped, tag = 'scoped memory for tpu_custom_call.1']
    %12 = vsyncpa [#allocation3], 0
    %s13 = scalar_lea.sflag [#allocation3], 1
    %14 = vsyncpa %s13, 0
    loop: start=0, step=1, limit=4
    $region2: #{tpu_custom_call.1} parent=1 // loop_pre_header
      _
    $region3: #{tpu_custom_call.1} parent=1 // loop_header
      %s16 = sphi 0, %s20
      %p17 = scmp.ge.s32.totalorder %s16, 4
      %s26 = sphi 0, %s28
      %s29 = sphi 0, %s26
      %s30 = sphi 0, %s29
      %s46 = sphi 0, %s30
      %s50 = sphi 0, %s50
      %s52 = sphi 0, %s50
      %s53 = sphi 0, %s52
      %s67 = sphi 0, %s53
      %s71 = sphi 0, %s71
      %s73 = sphi 0, %s71
      %s74 = sphi 0, %s73
      %s88 = sphi 0, %s74
      %s92 = sphi 0, %s92
      %s94 = sphi 0, %s92
      %s95 = sphi 0, %s94
      %s109 = sphi 0, %s95
      %s113 = sphi 0, %s113
      %s115 = sphi 0, %s113
      %s116 = sphi 0, %s115
      %s130 = sphi 0, %s116
      %s134 = sphi 0, %s134
      %s136 = sphi 0, %s134
      %s137 = sphi 0, %s136
      %s151 = sphi 0, %s137
      %s155 = sphi 0, %s155
      %s157 = sphi 0, %s155
      %s158 = sphi 0, %s157
      %s172 = sphi 0, %s158
      %s178 = sphi 0, %s180
      %s181 = sphi 0, %s178
      %s182 = sphi 0, %s181
      %s198 = sphi 0, %s182
    $region4: #{tpu_custom_call.1} parent=1 // loop_header_branch
      %19 = sbr.rel (%p17) target = $region8
    $region5: #{tpu_custom_call.1} parent=1 // loop_body
      %s21 = ssub.s32 %s16, 1
      %s22 = ssub.s32 %s16, 2
      %s23 = sadd.s32 %s16, 1
      %s24 = ssub.s32 %s16, %s23
      %p25 = scmp.eq.s32.totalorder %s24, 0
      %s27 = sadd.s32 %s26, 1
      %s28 = scalar_select %p25, %s26, %s27
      %p31 = pneg %p25
      %p32 = scmp.eq.s32.totalorder %s16, 1
      %p33 = por %p31, %p32
      %p34 = scmp.ne.s32.totalorder %s26, %s29
      %p35 = scmp.eq.s32.totalorder %s16, 0
      %p36 = por %p34, %p35
      %p37 = scmp.ne.s32.totalorder %s26, %s29
      %p38 = scmp.eq.s32.totalorder %s21, 1
      %p39 = por %p37, %p38
      %p40 = scmp.ne.s32.totalorder %s29, %s30
      %p41 = scmp.eq.s32.totalorder %s21, 0
      %p42 = por %p40, %p41
      %p43 = scmp.ne.s32.totalorder %s29, %s30
      %p44 = scmp.eq.s32.totalorder %s22, 1
      %p45 = por %p43, %p44
      %p47 = scmp.ne.s32.totalorder %s30, %s46
      %p48 = scmp.eq.s32.totalorder %s22, 0
      %p49 = por %p47, %p48
      %s51 = sadd.s32 %s50, 1
      %p54 = scmp.eq.s32.totalorder %s16, 1
      %p55 = scmp.ne.s32.totalorder %s50, %s52
      %p56 = scmp.eq.s32.totalorder %s16, 0
      %p57 = por %p55, %p56
      %p58 = scmp.ne.s32.totalorder %s50, %s52
      %p59 = scmp.eq.s32.totalorder %s21, 1
      %p60 = por %p58, %p59
      %p61 = scmp.ne.s32.totalorder %s52, %s53
      %p62 = scmp.eq.s32.totalorder %s21, 0
      %p63 = por %p61, %p62
      %p64 = scmp.ne.s32.totalorder %s52, %s53
      %p65 = scmp.eq.s32.totalorder %s22, 1
      %p66 = por %p64, %p65
      %p68 = scmp.ne.s32.totalorder %s53, %s67
      %p69 = scmp.eq.s32.totalorder %s22, 0
      %p70 = por %p68, %p69
      %s72 = sadd.s32 %s71, 1
      %p75 = scmp.eq.s32.totalorder %s16, 1
      %p76 = scmp.ne.s32.totalorder %s71, %s73
      %p77 = scmp.eq.s32.totalorder %s16, 0
      %p78 = por %p76, %p77
      %p79 = scmp.ne.s32.totalorder %s71, %s73
      %p80 = scmp.eq.s32.totalorder %s21, 1
      %p81 = por %p79, %p80
      %p82 = scmp.ne.s32.totalorder %s73, %s74
      %p83 = scmp.eq.s32.totalorder %s21, 0
      %p84 = por %p82, %p83
      %p85 = scmp.ne.s32.totalorder %s73, %s74
      %p86 = scmp.eq.s32.totalorder %s22, 1
      %p87 = por %p85, %p86
      %p89 = scmp.ne.s32.totalorder %s74, %s88
      %p90 = scmp.eq.s32.totalorder %s22, 0
      %p91 = por %p89, %p90
      %s93 = sadd.s32 %s92, 1
      %p96 = scmp.eq.s32.totalorder %s16, 1
      %p97 = scmp.ne.s32.totalorder %s92, %s94
      %p98 = scmp.eq.s32.totalorder %s16, 0
      %p99 = por %p97, %p98
      %p100 = scmp.ne.s32.totalorder %s92, %s94
      %p101 = scmp.eq.s32.totalorder %s21, 1
      %p102 = por %p100, %p101
      %p103 = scmp.ne.s32.totalorder %s94, %s95
      %p104 = scmp.eq.s32.totalorder %s21, 0
      %p105 = por %p103, %p104
      %p106 = scmp.ne.s32.totalorder %s94, %s95
      %p107 = scmp.eq.s32.totalorder %s22, 1
      %p108 = por %p106, %p107
      %p110 = scmp.ne.s32.totalorder %s95, %s109
      %p111 = scmp.eq.s32.totalorder %s22, 0
      %p112 = por %p110, %p111
      %s114 = sadd.s32 %s113, 1
      %p117 = scmp.eq.s32.totalorder %s16, 1
      %p118 = scmp.ne.s32.totalorder %s113, %s115
      %p119 = scmp.eq.s32.totalorder %s16, 0
      %p120 = por %p118, %p119
      %p121 = scmp.ne.s32.totalorder %s113, %s115
      %p122 = scmp.eq.s32.totalorder %s21, 1
      %p123 = por %p121, %p122
      %p124 = scmp.ne.s32.totalorder %s115, %s116
      %p125 = scmp.eq.s32.totalorder %s21, 0
      %p126 = por %p124, %p125
      %p127 = scmp.ne.s32.totalorder %s115, %s116
      %p128 = scmp.eq.s32.totalorder %s22, 1
      %p129 = por %p127, %p128
      %p131 = scmp.ne.s32.totalorder %s116, %s130
      %p132 = scmp.eq.s32.totalorder %s22, 0
      %p133 = por %p131, %p132
      %s135 = sadd.s32 %s134, 1
      %p138 = scmp.eq.s32.totalorder %s16, 1
      %p139 = scmp.ne.s32.totalorder %s134, %s136
      %p140 = scmp.eq.s32.totalorder %s16, 0
      %p141 = por %p139, %p140
      %p142 = scmp.ne.s32.totalorder %s134, %s136
      %p143 = scmp.eq.s32.totalorder %s21, 1
      %p144 = por %p142, %p143
      %p145 = scmp.ne.s32.totalorder %s136, %s137
      %p146 = scmp.eq.s32.totalorder %s21, 0
      %p147 = por %p145, %p146
      %p148 = scmp.ne.s32.totalorder %s136, %s137
      %p149 = scmp.eq.s32.totalorder %s22, 1
      %p150 = por %p148, %p149
      %p152 = scmp.ne.s32.totalorder %s137, %s151
      %p153 = scmp.eq.s32.totalorder %s22, 0
      %p154 = por %p152, %p153
      %s156 = sadd.s32 %s155, 1
      %p159 = scmp.eq.s32.totalorder %s16, 1
      %p160 = scmp.ne.s32.totalorder %s155, %s157
      %p161 = scmp.eq.s32.totalorder %s16, 0
      %p162 = por %p160, %p161
      %p163 = scmp.ne.s32.totalorder %s155, %s157
      %p164 = scmp.eq.s32.totalorder %s21, 1
      %p165 = por %p163, %p164
      %p166 = scmp.ne.s32.totalorder %s157, %s158
      %p167 = scmp.eq.s32.totalorder %s21, 0
      %p168 = por %p166, %p167
      %p169 = scmp.ne.s32.totalorder %s157, %s158
      %p170 = scmp.eq.s32.totalorder %s22, 1
      %p171 = por %p169, %p170
      %p173 = scmp.ne.s32.totalorder %s158, %s172
      %p174 = scmp.eq.s32.totalorder %s22, 0
      %p175 = por %p173, %p174
      %s176 = ssub.s32 %s16, %s23
      %p177 = scmp.eq.s32.totalorder %s176, 0
      %s179 = sadd.s32 %s178, 1
      %s180 = scalar_select %p177, %s178, %s179
      %p183 = pneg %p177
      %p184 = scmp.eq.s32.totalorder %s16, 1
      %p185 = por %p183, %p184
      %p186 = scmp.ne.s32.totalorder %s178, %s181
      %p187 = scmp.eq.s32.totalorder %s16, 0
      %p188 = por %p186, %p187
      %p189 = scmp.ne.s32.totalorder %s178, %s181
      %p190 = scmp.eq.s32.totalorder %s21, 1
      %p191 = por %p189, %p190
      %p192 = scmp.ne.s32.totalorder %s181, %s182
      %p193 = scmp.eq.s32.totalorder %s21, 0
      %p194 = por %p192, %p193
      %p195 = scmp.ne.s32.totalorder %s181, %s182
      %p196 = scmp.eq.s32.totalorder %s22, 1
      %p197 = por %p195, %p196
      %p199 = scmp.ne.s32.totalorder %s182, %s198
      %p200 = scmp.eq.s32.totalorder %s22, 0
      %p201 = por %p199, %p200
      %p202 = scmp.le.s32.totalorder 1, %s16
      %p203 = scmp.lt.s32.totalorder %s16, 3
      %p204 = pnand %p202, %p203
      %p205 = pneg %p204
      // Predicated region
      $region9: #{tpu_custom_call.1} parent=5 // pred_check
        _
      $region10: #{tpu_custom_call.1} parent=5 // pred_check_branch
        %207 = sbr.rel (%p204) target = $region12
      $region11: #{tpu_custom_call.1} parent=5 // pred_region
        %s208 = ssub.s32 %s16, 1
        // Predicated region
        $region13: #{tpu_custom_call.1} parent=11 // pred_check
          %p209 = pneg %p63
        $region14: #{tpu_custom_call.1} parent=11 // pred_check_branch
          %211 = sbr.rel (%p209) target = $region16
        $region15: #{tpu_custom_call.1} parent=11 // pred_region
          _
        $region16: #{tpu_custom_call.1} parent=11 // pred_fallthru
          _
        // Predicated region
        $region17: #{tpu_custom_call.1} parent=11 // pred_check
          %p212 = pneg %p84
        $region18: #{tpu_custom_call.1} parent=11 // pred_check_branch
          %214 = sbr.rel (%p212) target = $region20
        $region19: #{tpu_custom_call.1} parent=11 // pred_region
          _
        $region20: #{tpu_custom_call.1} parent=11 // pred_fallthru
          _
        // Predicated region
        $region21: #{tpu_custom_call.1} parent=11 // pred_check
          %p215 = pneg %p105
        $region22: #{tpu_custom_call.1} parent=11 // pred_check_branch
          %217 = sbr.rel (%p215) target = $region24
        $region23: #{tpu_custom_call.1} parent=11 // pred_region
          _
        $region24: #{tpu_custom_call.1} parent=11 // pred_fallthru
          _
        // Predicated region
        $region25: #{tpu_custom_call.1} parent=11 // pred_check
          %p218 = pneg %p126
        $region26: #{tpu_custom_call.1} parent=11 // pred_check_branch
          %220 = sbr.rel (%p218) target = $region28
        $region27: #{tpu_custom_call.1} parent=11 // pred_region
          _
        $region28: #{tpu_custom_call.1} parent=11 // pred_fallthru
          _
        // Predicated region
        $region29: #{tpu_custom_call.1} parent=11 // pred_check
          %p221 = pneg %p147
        $region30: #{tpu_custom_call.1} parent=11 // pred_check_branch
          %223 = sbr.rel (%p221) target = $region32
        $region31: #{tpu_custom_call.1} parent=11 // pred_region
          _
        $region32: #{tpu_custom_call.1} parent=11 // pred_fallthru
          _
        // Predicated region
        $region33: #{tpu_custom_call.1} parent=11 // pred_check
          %p224 = pneg %p168
        $region34: #{tpu_custom_call.1} parent=11 // pred_check_branch
          %226 = sbr.rel (%p224) target = $region36
        $region35: #{tpu_custom_call.1} parent=11 // pred_region
          _
        $region36: #{tpu_custom_call.1} parent=11 // pred_fallthru
          _
      $region12: #{tpu_custom_call.1} parent=5 // pred_fallthru
        _
      %p227 = scmp.lt.s32.totalorder %s16, 2
      // Predicated region
      $region37: #{tpu_custom_call.1} parent=5 // pred_check
        %p228 = pneg %p227
      $region38: #{tpu_custom_call.1} parent=5 // pred_check_branch
        %230 = sbr.rel (%p228) target = $region40
      $region39: #{tpu_custom_call.1} parent=5 // pred_region
        // Predicated region
        $region41: #{tpu_custom_call.1} parent=39 // pred_check
          %p231 = pneg %p36
        $region42: #{tpu_custom_call.1} parent=39 // pred_check_branch
          %233 = sbr.rel (%p231) target = $region44
        $region43: #{tpu_custom_call.1} parent=39 // pred_region
          %p234 = scmp.lt.s32.totalorder %s16, 1
          %s235 = scalar_select %p234, %s16, 1
          %s236 = smul.addr %s235, 8
          %s237 = scalar_lea.vmem %s0, %s236
        $region44: #{tpu_custom_call.1} parent=39 // pred_fallthru
          _
      $region40: #{tpu_custom_call.1} parent=5 // pred_fallthru
        _
      %p238 = scmp.le.s32.totalorder 1, %s16
      %p239 = scmp.lt.s32.totalorder %s16, 3
      %p240 = pnand %p238, %p239
      %p241 = pneg %p240
      // Predicated region
      $region45: #{tpu_custom_call.1} parent=5 // pred_check
        _
      $region46: #{tpu_custom_call.1} parent=5 // pred_check_branch
        %243 = sbr.rel (%p240) target = $region48
      $region47: #{tpu_custom_call.1} parent=5 // pred_region
        %s244 = ssub.s32 %s16, 1
        %p245 = scmp.lt.s32.totalorder %s21, 1
        %s246 = scalar_select %p245, %s21, 1
        %s247 = smul.addr %s246, 8
        %s248 = scalar_lea.vmem %s0, %s247
        %p249 = pneg %p42
        %p250 = pneg %p39
        %p251 = pneg %p63
        %p252 = pneg %p60
        %p253 = pneg %p84
        %p254 = pneg %p81
        %p255 = pneg %p105
        %p256 = pneg %p102
        %p257 = pneg %p126
        %p258 = pneg %p123
        %p259 = pneg %p147
        %p260 = pneg %p144
        %p261 = pneg %p168
        %p262 = pneg %p165
        %p263 = pneg %p194
        %p264 = pneg %p191
        %s265 = sand.u32 %s181, 1
        %s266 = scalar_lea.sflag [#allocation3], %s265
        %s267 = sand.u32 %s181, 1
        %s268 = smul.addr %s267, 8
        %s269 = scalar_lea.vmem [#allocation2], %s268
        %p270 = scmp.lt.s32.totalorder %s21, 1
        %s271 = scalar_select %p270, %s21, 1
        %s272 = smul.addr %s271, 8
        %s273 = scalar_lea.vmem %s0, %s272
        %v274 = vld [vmem:[%s273] sm:$0xff]
        %v275 = vld [vmem:[%s1] sm:$0x1]
        %277 = vset.pattern.permute.xlu0 0
        %278 = vperm.xlu0 %277, %v274
        %v279 = vpop.permute.xlu0 %278
        %v282 = vlaneseq
        %v283 = vshrl.u32 %v282, 7
        %v284 = vsub.s32 0, %v283
        %v285 = vrot.slane %v275, %v284
        %v287 = vmul.f32 %v279, %v285
        %v288 = vld [vmem:[%s2] sm:$0x1]
        %v290 = vlaneseq
        %v291 = vshrl.u32 %v290, 7
        %v292 = vsub.s32 0, %v291
        %v293 = vrot.slane %v288, %v292
        %v295 = vadd.f32 %v287, %v293
        %v296 = vmax.f32 %v295, 0.0
        %v297 = vld [vmem:[%s3] sm:$0xff]
        %v298 = vld [vmem:[%s3 + $0x8] sm:$0xff]
        %v299 = vld [vmem:[%s3 + $0x10] sm:$0xff]
        %v300 = vld [vmem:[%s3 + $0x18] sm:$0xff]
        %v301 = vld [vmem:[%s3 + $0x20] sm:$0xff]
        %v302 = vld [vmem:[%s3 + $0x28] sm:$0xff]
        %v303 = vld [vmem:[%s3 + $0x30] sm:$0xff]
        %v304 = vld [vmem:[%s3 + $0x38] sm:$0xff]
        %v305 = vld [vmem:[%s3 + $0x40] sm:$0xff]
        %v306 = vld [vmem:[%s3 + $0x48] sm:$0xff]
        %v307 = vld [vmem:[%s3 + $0x50] sm:$0xff]
        %v308 = vld [vmem:[%s3 + $0x58] sm:$0xff]
        %v309 = vld [vmem:[%s3 + $0x60] sm:$0xff]
        %v310 = vld [vmem:[%s3 + $0x68] sm:$0xff]
        %v311 = vld [vmem:[%s3 + $0x70] sm:$0xff]
        %v312 = vld [vmem:[%s3 + $0x78] sm:$0xff]
        %v313 = vld [vmem:[%s4] sm:$0x1]
        %v315 = vlaneseq
        %v316 = vshrl.u32 %v315, 7
        %v317 = vsub.s32 0, %v316
        %v318 = vrot.slane %v313, %v317
        %320 = vmatprep.subr.mxu0 0.0
        %321 = vmatpush1.msra.mxu0 %v297
        %322 = vmatprep.subr.mxu0 0.0
        %323 = vmatpush1.msra.mxu0 %v298
        %324 = vmatprep.subr.mxu0 0.0
        %325 = vmatpush1.msra.mxu0 %v299
        %326 = vmatprep.subr.mxu0 0.0
        %327 = vmatpush1.msra.mxu0 %v300
        %328 = vmatprep.subr.mxu0 0.0
        %329 = vmatpush1.msra.mxu0 %v301
        %330 = vmatprep.subr.mxu0 0.0
        %331 = vmatpush1.msra.mxu0 %v302
        %332 = vmatprep.subr.mxu0 0.0
        %333 = vmatpush1.msra.mxu0 %v303
        %334 = vmatprep.subr.mxu0 0.0
        %335 = vmatpush1.msra.mxu0 %v304
        %336 = vmatprep.subr.mxu0 0.0
        %337 = vmatpush1.msra.mxu0 %v305
        %338 = vmatprep.subr.mxu0 0.0
        %339 = vmatpush1.msra.mxu0 %v306
        %340 = vmatprep.subr.mxu0 0.0
        %341 = vmatpush1.msra.mxu0 %v307
        %342 = vmatprep.subr.mxu0 0.0
        %343 = vmatpush1.msra.mxu0 %v308
        %344 = vmatprep.subr.mxu0 0.0
        %345 = vmatpush1.msra.mxu0 %v309
        %346 = vmatprep.subr.mxu0 0.0
        %347 = vmatpush1.msra.mxu0 %v310
        %348 = vmatprep.subr.mxu0 0.0
        %349 = vmatpush1.msra.mxu0 %v311
        %350 = vmatprep.subr.mxu0 0.0
        %351 = vmatpush1.msra.mxu0 %v312
        %352 = vmatprep.subr.mxu0 0.0
        %353 = vmatpush1.msra.mxu0 0.0
        %354 = vmatprep.subr.mxu0 0.0
        %355 = vmatpush1.msra.mxu0 0.0
        %356 = vmatprep.subr.mxu0 0.0
        %357 = vmatpush1.msra.mxu0 0.0
        %358 = vmatprep.subr.mxu0 0.0
        %359 = vmatpush1.msra.mxu0 0.0
        %360 = vmatprep.subr.mxu0 0.0
        %361 = vmatpush1.msra.mxu0 0.0
        %362 = vmatprep.subr.mxu0 0.0
        %363 = vmatpush1.msra.mxu0 0.0
        %364 = vmatprep.subr.mxu0 0.0
        %365 = vmatpush1.msra.mxu0 0.0
        %366 = vmatprep.subr.mxu0 0.0
        %367 = vmatpush1.msra.mxu0 0.0
        %368 = vmatprep.subr.mxu0 0.0
        %369 = vmatpush1.msra.mxu0 0.0
        %370 = vmatprep.subr.mxu0 0.0
        %371 = vmatpush1.msra.mxu0 0.0
        %372 = vmatprep.subr.mxu0 0.0
        %373 = vmatpush1.msra.mxu0 0.0
        %374 = vmatprep.subr.mxu0 0.0
        %375 = vmatpush1.msra.mxu0 0.0
        %376 = vmatprep.subr.mxu0 0.0
        %377 = vmatpush1.msra.mxu0 0.0
        %378 = vmatprep.subr.mxu0 0.0
        %379 = vmatpush1.msra.mxu0 0.0
        %380 = vmatprep.subr.mxu0 0.0
        %381 = vmatpush1.msra.mxu0 0.0
        %382 = vmatprep.subr.mxu0 0.0
        %383 = vmatpush1.msra.mxu0 0.0
        %384 = vmatprep.mubr.f32.mxu0 0.0
        %385 = vmatmul.mubr.f32.gmra.mrb[0].mxu0 %v296
        %v386 = vpop.f32.mrb[0].mxu0
        %v387 = vadd.f32 %v318, %v386
        %v388 = vpop.f32.mrb[0].mxu0
        %389 = vdwg.mxu0
        %v390 = vmax.f32 %v387, 0.0
        %v391 = vld [vmem:[%s5] sm:$0xff]
        %v392 = vld [vmem:[%s5 + $0x8] sm:$0xff]
        %v393 = vld [vmem:[%s5 + $0x10] sm:$0xff]
        %v394 = vld [vmem:[%s5 + $0x18] sm:$0xff]
        %v395 = vld [vmem:[%s5 + $0x20] sm:$0xff]
        %v396 = vld [vmem:[%s5 + $0x28] sm:$0xff]
        %v397 = vld [vmem:[%s5 + $0x30] sm:$0xff]
        %v398 = vld [vmem:[%s5 + $0x38] sm:$0xff]
        %v399 = vld [vmem:[%s5 + $0x40] sm:$0xff]
        %v400 = vld [vmem:[%s5 + $0x48] sm:$0xff]
        %v401 = vld [vmem:[%s5 + $0x50] sm:$0xff]
        %v402 = vld [vmem:[%s5 + $0x58] sm:$0xff]
        %v403 = vld [vmem:[%s5 + $0x60] sm:$0xff]
        %v404 = vld [vmem:[%s5 + $0x68] sm:$0xff]
        %v405 = vld [vmem:[%s5 + $0x70] sm:$0xff]
        %v406 = vld [vmem:[%s5 + $0x78] sm:$0xff]
        %v407 = vld [vmem:[%s6] sm:$0x1]
        %v409 = vlaneseq
        %v410 = vshrl.u32 %v409, 7
        %v411 = vsub.s32 0, %v410
        %v412 = vrot.slane %v407, %v411
        %414 = vmatprep.subr.mxu0 0.0
        %415 = vmatpush1.msra.mxu0 %v391
        %416 = vmatprep.subr.mxu0 0.0
        %417 = vmatpush1.msra.mxu0 %v392
        %418 = vmatprep.subr.mxu0 0.0
        %419 = vmatpush1.msra.mxu0 %v393
        %420 = vmatprep.subr.mxu0 0.0
        %421 = vmatpush1.msra.mxu0 %v394
        %422 = vmatprep.subr.mxu0 0.0
        %423 = vmatpush1.msra.mxu0 %v395
        %424 = vmatprep.subr.mxu0 0.0
        %425 = vmatpush1.msra.mxu0 %v396
        %426 = vmatprep.subr.mxu0 0.0
        %427 = vmatpush1.msra.mxu0 %v397
        %428 = vmatprep.subr.mxu0 0.0
        %429 = vmatpush1.msra.mxu0 %v398
        %430 = vmatprep.subr.mxu0 0.0
        %431 = vmatpush1.msra.mxu0 %v399
        %432 = vmatprep.subr.mxu0 0.0
        %433 = vmatpush1.msra.mxu0 %v400
        %434 = vmatprep.subr.mxu0 0.0
        %435 = vmatpush1.msra.mxu0 %v401
        %436 = vmatprep.subr.mxu0 0.0
        %437 = vmatpush1.msra.mxu0 %v402
        %438 = vmatprep.subr.mxu0 0.0
        %439 = vmatpush1.msra.mxu0 %v403
        %440 = vmatprep.subr.mxu0 0.0
        %441 = vmatpush1.msra.mxu0 %v404
        %442 = vmatprep.subr.mxu0 0.0
        %443 = vmatpush1.msra.mxu0 %v405
        %444 = vmatprep.subr.mxu0 0.0
        %445 = vmatpush1.msra.mxu0 %v406
        %446 = vmatprep.subr.mxu0 0.0
        %447 = vmatpush1.msra.mxu0 0.0
        %448 = vmatprep.subr.mxu0 0.0
        %449 = vmatpush1.msra.mxu0 0.0
        %450 = vmatprep.subr.mxu0 0.0
        %451 = vmatpush1.msra.mxu0 0.0
        %452 = vmatprep.subr.mxu0 0.0
        %453 = vmatpush1.msra.mxu0 0.0
        %454 = vmatprep.subr.mxu0 0.0
        %455 = vmatpush1.msra.mxu0 0.0
        %456 = vmatprep.subr.mxu0 0.0
        %457 = vmatpush1.msra.mxu0 0.0
        %458 = vmatprep.subr.mxu0 0.0
        %459 = vmatpush1.msra.mxu0 0.0
        %460 = vmatprep.subr.mxu0 0.0
        %461 = vmatpush1.msra.mxu0 0.0
        %462 = vmatprep.subr.mxu0 0.0
        %463 = vmatpush1.msra.mxu0 0.0
        %464 = vmatprep.subr.mxu0 0.0
        %465 = vmatpush1.msra.mxu0 0.0
        %466 = vmatprep.subr.mxu0 0.0
        %467 = vmatpush1.msra.mxu0 0.0
        %468 = vmatprep.subr.mxu0 0.0
        %469 = vmatpush1.msra.mxu0 0.0
        %470 = vmatprep.subr.mxu0 0.0
        %471 = vmatpush1.msra.mxu0 0.0
        %472 = vmatprep.subr.mxu0 0.0
        %473 = vmatpush1.msra.mxu0 0.0
        %474 = vmatprep.subr.mxu0 0.0
        %475 = vmatpush1.msra.mxu0 0.0
        %476 = vmatprep.subr.mxu0 0.0
        %477 = vmatpush1.msra.mxu0 0.0
        %478 = vmatprep.mubr.f32.mxu0 0.0
        %479 = vmatmul.mubr.f32.gmra.mrb[0].mxu0 %v390
        %v480 = vpop.f32.mrb[0].mxu0
        %v481 = vadd.f32 %v412, %v480
        %v482 = vpop.f32.mrb[0].mxu0
        %483 = vdwg.mxu0
        %vm484 = vcmask 162816
        %485 = vst.msk [vmem:[%s269] sm:$0xff] %vm484, %v481
        %s486 = sand.u32 %s181, 1
        %s487 = scalar_lea.sflag [#allocation3], %s486
        %s488 = sand.u32 %s181, 1
        %s489 = smul.addr %s488, 8
        %s490 = scalar_lea.vmem [#allocation2], %s489
        // Predicated region
        $region49: #{tpu_custom_call.1} parent=47 // pred_check
          %p491 = pneg %p191
        $region50: #{tpu_custom_call.1} parent=47 // pred_check_branch
          %493 = sbr.rel (%p491) target = $region52
        $region51: #{tpu_custom_call.1} parent=47 // pred_region
          %s495 = ssub.s32 128, 128
          %496 = vsyncadd %s487, %s495
          %s497 = smul.addr %s21, 128
          %s498 = scalar_lea.hbm %s7, %s497
          %s500 = sshll.u32 %s490, 4
          %s501 = int_to_ptr.vmem [resolvable:$true] %s500
          %503 = dma.vmem_to_hbm [thread:$0]  %s501, 128, %s498, %s487
        $region52: #{tpu_custom_call.1} parent=47 // pred_fallthru
          _
      $region48: #{tpu_custom_call.1} parent=5 // pred_fallthru
        _
      %p504 = scmp.le.s32.totalorder 2, %s16
      // Predicated region
      $region53: #{tpu_custom_call.1} parent=5 // pred_check
        %p505 = pneg %p504
      $region54: #{tpu_custom_call.1} parent=5 // pred_check_branch
        %507 = sbr.rel (%p505) target = $region56
      $region55: #{tpu_custom_call.1} parent=5 // pred_region
        %s508 = ssub.s32 %s16, 2
        // Predicated region
        $region57: #{tpu_custom_call.1} parent=55 // pred_check
          %p509 = pneg %p197
        $region58: #{tpu_custom_call.1} parent=55 // pred_check_branch
          %511 = sbr.rel (%p509) target = $region60
        $region59: #{tpu_custom_call.1} parent=55 // pred_region
          %s512 = sand.u32 %s182, 1
          %s513 = scalar_lea.sflag [#allocation3], %s512
          %s514 = sand.u32 %s182, 1
          %s515 = smul.addr %s514, 8
          %s516 = scalar_lea.vmem [#allocation2], %s515
          %517 = dma.done %s513, 128
        $region60: #{tpu_custom_call.1} parent=55 // pred_fallthru
          _
      $region56: #{tpu_custom_call.1} parent=5 // pred_fallthru
        _
    $region6: #{tpu_custom_call.1} parent=1 // loop_footer
      %s20 = sadd.s32 1, %s16
    $region7: #{tpu_custom_call.1} parent=1 // loop_footer_branch
      %15 = sbr.rel target = $region3
    $region8: #{tpu_custom_call.1} parent=1 // loop_exit
      _
    %518 = vsyncpa [#allocation3], 1
    %s519 = scalar_lea.sflag [#allocation3], 1
    %520 = vsyncpa %s519, 1

</llo_original>
